<compile_context>
chip_gen: v7x
topology: tpu7x:2x2x1
jax: 0.10.0
libtpu: 0.0.40
codegen_flags: <defaults>
</compile_context>

<pallas_src>
import functools

import jax
import jax.numpy as jnp
from jax import lax
from jax.experimental import pallas as pl
from jax.experimental.pallas import tpu as pltpu


def _round_up(a, m):
    return (a + m - 1) // m * m


def _rpn_kernel(x_ref, w1_ref, b1_ref, wh_ref, bh_ref, cls_ref, bbox_ref,
                patches_ref, *, Wp, Cin, Ccls_p):
    """One (batch, row-tile) step, channel-major.

    x_ref:       (Cin, Lin)      bf16  flat row-padded input window (TH+2 rows
                                       of the (W+2)-padded image + zero tail)
    w1_ref:      (Cmid, Kp)      bf16  conv1 taps, (dy,dx,c) order, K padded to 8
    b1_ref:      (Cmid, 1)       f32   conv1 bias (f32 epilogue)
    wh_ref:      (Chead_p, Cmid) bf16  fused 1x1 heads (cls rows 0..7, bbox 8..)
    bh_ref:      (Chead_p, 1)    f32   fused head bias
    cls_ref:     (Ccls_p, Q)     f32   lane-dense output slab for this tile
    bbox_ref:    (Cbox_p, Q)     f32
    patches_ref: (Kp, Q)         bf16  im2col scratch
    """
    Q = cls_ref.shape[-1]
    K = 9 * Cin
    Kp = patches_ref.shape[0]

    # im2col: nine static lane-shifted slices of the flat row-padded window,
    # written straight into the bf16 patches scratch (no concatenate copy).
    for dy in range(3):
        for dx in range(3):
            off = dy * Wp + dx
            r0 = (dy * 3 + dx) * Cin
            patches_ref[r0:r0 + Cin, :] = x_ref[:, off:off + Q]
    if Kp > K:  # zero the K padding rows (cheap; keeps scratch valid per-core)
        patches_ref[K:Kp, :] = jnp.zeros((Kp - K, Q), dtype=patches_ref.dtype)

    # conv1 (3x3, SAME) as ONE bf16 MXU matmul, f32 accumulate.
    # Bias add + ReLU stay in f32 (v5e has no bf16 VPU).
    hid = jnp.dot(w1_ref[...], patches_ref[...],
                  preferred_element_type=jnp.float32)          # (Cmid, Q) f32
    hid = jnp.maximum(hid + b1_ref[...], 0.0)

    # Fused cls/bbox 1x1 heads as ONE bf16 matmul; 8-aligned sublane split.
    heads = jnp.dot(wh_ref[...], hid.astype(jnp.bfloat16),
                    preferred_element_type=jnp.float32) + bh_ref[...]
    cls_ref[...] = heads[:Ccls_p, :]
    bbox_ref[...] = heads[Ccls_p:, :]


def rpn_forward(x_nchw, w1_hwio, b1, wc_io, bc, wb_io, bb, *, rows_per_tile=None):
    """Pallas RPN forward. x_nchw: (B, Cin, H, W) float32.

    Weights: w1_hwio (3,3,Cin,Cmid) HWIO, b1 (Cmid,),
             wc_io (Cmid, 2A), bc (2A,), wb_io (Cmid, 4A), bb (4A,)
             (1x1 conv weights in IO layout, i.e. PyTorch weight[:, :, 0, 0].T).
    Returns (rpn_cls, rpn_bbox) in NCHW, matching the PyTorch module.
    """
    B, Cin, H, W = x_nchw.shape
    Cmid = w1_hwio.shape[3]
    Ccls = wc_io.shape[1]
    Cbox = wb_io.shape[1]
    Wp = W + 2                                   # zero column each side

    if rows_per_tile is None:
        # ~4k output lanes per tile: sized so bf16 patches/hid fit the ~32 MiB
        # scoped VMEM on v7x at production Cmid; v5e/v6e (128 MiB) can go bigger.
        rows_per_tile = max(1, 4096 // Wp)
    TH = min(rows_per_tile, H)                   # output rows per tile
    NT = -(-H // TH)                             # number of row tiles

    Q = _round_up(TH * Wp, 128)                  # lane-dense per-tile out slab
    Lin = _round_up(Q + 2 * Wp + 2, 128)         # per-tile input window length
    Ccls_p = _round_up(Ccls, 8)                  # 8-aligned head split
    Cbox_p = _round_up(Cbox, 8)
    Chead_p = Ccls_p + Cbox_p
    K = 9 * Cin
    Kp = _round_up(K, 8)

    f32, bf16 = jnp.float32, jnp.bfloat16

    # ---- input: SAME zero padding (1 row/col each side) + extra bottom rows
    # so H is a multiple of TH, then split into overlapping (TH+2)-row windows.
    Hrows = NT * TH
    xp = jnp.pad(x_nchw.astype(f32),
                 ((0, 0), (0, 0), (1, 1 + (Hrows - H)), (1, 1))).astype(bf16)
    win_len = (TH + 2) * Wp
    tiles = []
    for t in range(NT):
        win = xp[:, :, t * TH: t * TH + TH + 2, :].reshape(B, Cin, win_len)
        tiles.append(jnp.pad(win, ((0, 0), (0, 0), (0, Lin - win_len))))
    x_tiles = jnp.stack(tiles, axis=1)                  # (B, NT, Cin, Lin) bf16

    # ---- weights (channel-major, bf16 matmul operands, f32 biases) ---------
    # w1_hwio[dy,dx,c,m] -> row m, column (dy*3+dx)*Cin + c, K padded to Kp.
    w1_pack = jnp.transpose(w1_hwio, (3, 0, 1, 2)).reshape(Cmid, K)
    w1_pack = jnp.pad(w1_pack, ((0, 0), (0, Kp - K))).astype(bf16)   # (Cmid, Kp)
    b1_col = b1.reshape(Cmid, 1).astype(f32)

    # Fused 1x1 heads, cls padded to Ccls_p rows so the split is sublane-aligned.
    wh = jnp.zeros((Chead_p, Cmid), f32)
    wh = wh.at[:Ccls].set(wc_io.T).at[Ccls_p:Ccls_p + Cbox].set(wb_io.T)
    wh = wh.astype(bf16)                                              # (Chead_p, Cmid)
    bh = jnp.zeros((Chead_p, 1), f32)
    bh = bh.at[:Ccls, 0].set(bc).at[Ccls_p:Ccls_p + Cbox, 0].set(bb)  # f32 epilogue

    # ---- grid spec: (batch, row-tile), both parallel (megacore on v7x) -----
    # Constant operands live whole-array in VMEM (not pipelined -> no 2x
    # double-buffer cost for them).
    vmem_const = lambda: pl.BlockSpec(memory_space=pltpu.MemorySpace.VMEM)
    grid_spec = pltpu.PrefetchScalarGridSpec(
        num_scalar_prefetch=0,
        grid=(B, NT),
        in_specs=[
            pl.BlockSpec((pl.Squeezed(), pl.Squeezed(), Cin, Lin),
                         lambda b, t: (b, t, 0, 0)),
            vmem_const(),   # w1_pack
            vmem_const(),   # b1
            vmem_const(),   # wh
            vmem_const(),   # bh
        ],
        out_specs=[
            pl.BlockSpec((pl.Squeezed(), Ccls_p, Q), lambda b, t: (b, 0, t)),
            pl.BlockSpec((pl.Squeezed(), Cbox_p, Q), lambda b, t: (b, 0, t)),
        ],
        scratch_shapes=[pltpu.VMEM((Kp, Q), bf16)],     # im2col patches
    )

    flops = 2 * B * NT * Q * (Cmid * Kp + Chead_p * Cmid)
    bytes_accessed = (B * NT * Cin * Lin * 2                     # bf16 input
                      + (Cmid * Kp + Chead_p * Cmid) * 2         # bf16 weights
                      + (Cmid + 2 * Chead_p) * 4                 # f32 biases
                      + B * (Ccls_p + Cbox_p) * NT * Q * 4)      # f32 outputs

    cls_cm, bbox_cm = pl.pallas_call(
        functools.partial(_rpn_kernel, Wp=Wp, Cin=Cin, Ccls_p=Ccls_p),
        out_shape=(
            jax.ShapeDtypeStruct((B, Ccls_p, NT * Q), f32),
            jax.ShapeDtypeStruct((B, Cbox_p, NT * Q), f32),
        ),
        grid_spec=grid_spec,
        compiler_params=pltpu.CompilerParams(
            dimension_semantics=("parallel", "parallel"),
            vmem_limit_bytes=32 * 1024 * 1024),
        cost_estimate=pl.CostEstimate(flops=flops, transcendentals=0,
                                      bytes_accessed=bytes_accessed),
    )(x_tiles, w1_pack, b1_col, wh, bh)

    # ---- strip lane / channel / row padding (cheap: outputs are small) -----
    def unpack(slab, C):
        s = slab.reshape(B, slab.shape[1], NT, Q)[:, :C, :, :TH * Wp]
        s = s.reshape(B, C, NT * TH, Wp)
        return s[:, :, :H, :W]

    return unpack(cls_cm, Ccls), unpack(bbox_cm, Cbox)


def _rpn_reference(x_nchw, w1_hwio, b1, wc_io, bc, wb_io, bb):
    """Pure-JAX f32 reference (XLA conv) for correctness checking."""
    x_nhwc = jnp.transpose(x_nchw, (0, 2, 3, 1))
    hid = lax.conv_general_dilated(
        x_nhwc, w1_hwio, window_strides=(1, 1), padding="SAME",
        dimension_numbers=("NHWC", "HWIO", "NHWC"),
        precision=lax.Precision.HIGHEST)
    hid = jnp.maximum(hid + b1[None, None, None, :], 0.0)
    cls = jnp.einsum("bhwc,co->bhwo", hid, wc_io,
                     precision=lax.Precision.HIGHEST) + bc
    bbox = jnp.einsum("bhwc,co->bhwo", hid, wb_io,
                      precision=lax.Precision.HIGHEST) + bb
    return (jnp.transpose(cls, (0, 3, 1, 2)),
            jnp.transpose(bbox, (0, 3, 1, 2)))


if __name__ == "__main__":
    # Small shapes consistent with the module.
    B, Cin, H, W = 2, 4, 16, 16
    Cmid = 32
    num_anchors = 3

    key = jax.random.PRNGKey(0)
    kx, kw1, kb1, kwc, kbc, kwb, kbb = jax.random.split(key, 7)

    x = jax.random.normal(kx, (B, Cin, H, W), dtype=jnp.float32)

    # Deterministic synthetic parameters (HWIO / IO layouts).
    w1 = jax.random.normal(kw1, (3, 3, Cin, Cmid), dtype=jnp.float32) * 0.1
    b1 = jax.random.normal(kb1, (Cmid,), dtype=jnp.float32) * 0.1
    wc = jax.random.normal(kwc, (Cmid, num_anchors * 2), dtype=jnp.float32) * 0.1
    bc = jax.random.normal(kbc, (num_anchors * 2,), dtype=jnp.float32) * 0.1
    wb = jax.random.normal(kwb, (Cmid, num_anchors * 4), dtype=jnp.float32) * 0.1
    bb = jax.random.normal(kbb, (num_anchors * 4,), dtype=jnp.float32) * 0.1

    # rows_per_tile=8 -> 2 spatial tiles: exercises the (batch, row-tile) grid.
    fwd = jax.jit(functools.partial(rpn_forward, rows_per_tile=8))
    rpn_cls, rpn_bbox = fwd(x, w1, b1, wc, bc, wb, bb)
    jax.block_until_ready((rpn_cls, rpn_bbox))

    # Sanity check against the pure-JAX f32 reference.  bf16 MXU operands
    # (f32 accumulate, f32 bias/ReLU) bound the error to ~1e-2 at these stats.
    ref_cls, ref_bbox = _rpn_reference(x, w1, b1, wc, bc, wb, bb)
    assert rpn_cls.shape == (B, num_anchors * 2, H, W)
    assert rpn_bbox.shape == (B, num_anchors * 4, H, W)
    assert jnp.allclose(rpn_cls, ref_cls, atol=5e-2, rtol=5e-2), \
        float(jnp.max(jnp.abs(rpn_cls - ref_cls)))
    assert jnp.allclose(rpn_bbox, ref_bbox, atol=5e-2, rtol=5e-2), \
        float(jnp.max(jnp.abs(rpn_bbox - ref_bbox)))

    print("KERNEL_OK")
</pallas_src>

<mosaic_0001>
module attributes {stable_mosaic.version = 11 : i64} {
  func.func @_rpn_kernel(%arg0: i32, %arg1: i32, %arg2: memref<1x1x4x384xbf16, #tpu.memory_space<vmem>>, %arg3: memref<32x40xbf16, #tpu.memory_space<vmem>>, %arg4: memref<32x1xf32, #tpu.memory_space<vmem>>, %arg5: memref<24x32xbf16, #tpu.memory_space<vmem>>, %arg6: memref<24x1xf32, #tpu.memory_space<vmem>>, %arg7: memref<1x8x256xf32, #tpu.memory_space<vmem>>, %arg8: memref<1x16x256xf32, #tpu.memory_space<vmem>>, %arg9: memref<40x256xbf16, #tpu.memory_space<vmem>>) attributes {dimension_semantics = [#tpu.dimension_semantics<parallel>, #tpu.dimension_semantics<parallel>], iteration_bounds = array<i64: 2, 2>, scalar_prefetch = 0 : i64, scratch_operands = 1 : i64, tpu.core_type = #tpu.core_type<tc>, window_params = [{transform_indices = @transform_0, window_bounds = array<i64: 1, 1, 4, 384>}, {pipeline_mode = #tpu.pipeline_mode<synchronous>, transform_indices = @transform_1, window_bounds = array<i64: 32, 40>}, {pipeline_mode = #tpu.pipeline_mode<synchronous>, transform_indices = @transform_2, window_bounds = array<i64: 32, 1>}, {pipeline_mode = #tpu.pipeline_mode<synchronous>, transform_indices = @transform_3, window_bounds = array<i64: 24, 32>}, {pipeline_mode = #tpu.pipeline_mode<synchronous>, transform_indices = @transform_4, window_bounds = array<i64: 24, 1>}, {transform_indices = @transform_5, window_bounds = array<i64: 1, 8, 256>}, {transform_indices = @transform_6, window_bounds = array<i64: 1, 16, 256>}]} {
    %c0 = arith.constant 0 : index
    %c0_0 = arith.constant 0 : index
    %c0_1 = arith.constant 0 : index
    %c0_2 = arith.constant 0 : index
    %0 = vector.load %arg2[%c0, %c0_0, %c0_1, %c0_2] : memref<1x1x4x384xbf16, #tpu.memory_space<vmem>>, vector<1x1x4x256xbf16>
    %1 = vector.shape_cast %0 : vector<1x1x4x256xbf16> to vector<4x256xbf16>
    %c0_3 = arith.constant 0 : index
    %c0_4 = arith.constant 0 : index
    %2 = vector.load %arg9[%c0_3, %c0_4] : memref<40x256xbf16, #tpu.memory_space<vmem>>, vector<4x256xbf16>
    tpu.vector_store %arg9[%c0_3, %c0_4], %1 {strides = array<i32>} : memref<40x256xbf16, #tpu.memory_space<vmem>>, vector<4x256xbf16>,
    %c0_5 = arith.constant 0 : index
    %c0_6 = arith.constant 0 : index
    %c0_7 = arith.constant 0 : index
    %c1 = arith.constant 1 : index
    %3 = vector.load %arg2[%c0_5, %c0_6, %c0_7, %c1] : memref<1x1x4x384xbf16, #tpu.memory_space<vmem>>, vector<1x1x4x256xbf16>
    %4 = vector.shape_cast %3 : vector<1x1x4x256xbf16> to vector<4x256xbf16>
    %c4 = arith.constant 4 : index
    %c0_8 = arith.constant 0 : index
    %5 = vector.load %arg9[%c4, %c0_8] : memref<40x256xbf16, #tpu.memory_space<vmem>>, vector<4x256xbf16>
    tpu.vector_store %arg9[%c4, %c0_8], %4 {strides = array<i32>} : memref<40x256xbf16, #tpu.memory_space<vmem>>, vector<4x256xbf16>,
    %c0_9 = arith.constant 0 : index
    %c0_10 = arith.constant 0 : index
    %c0_11 = arith.constant 0 : index
    %c2 = arith.constant 2 : index
    %6 = vector.load %arg2[%c0_9, %c0_10, %c0_11, %c2] : memref<1x1x4x384xbf16, #tpu.memory_space<vmem>>, vector<1x1x4x256xbf16>
    %7 = vector.shape_cast %6 : vector<1x1x4x256xbf16> to vector<4x256xbf16>
    %c8 = arith.constant 8 : index
    %c0_12 = arith.constant 0 : index
    %8 = vector.load %arg9[%c8, %c0_12] : memref<40x256xbf16, #tpu.memory_space<vmem>>, vector<4x256xbf16>
    tpu.vector_store %arg9[%c8, %c0_12], %7 {strides = array<i32>} : memref<40x256xbf16, #tpu.memory_space<vmem>>, vector<4x256xbf16>,
    %c0_13 = arith.constant 0 : index
    %c0_14 = arith.constant 0 : index
    %c0_15 = arith.constant 0 : index
    %c18 = arith.constant 18 : index
    %9 = vector.load %arg2[%c0_13, %c0_14, %c0_15, %c18] : memref<1x1x4x384xbf16, #tpu.memory_space<vmem>>, vector<1x1x4x256xbf16>
    %10 = vector.shape_cast %9 : vector<1x1x4x256xbf16> to vector<4x256xbf16>
    %c12 = arith.constant 12 : index
    %c0_16 = arith.constant 0 : index
    %11 = vector.load %arg9[%c12, %c0_16] : memref<40x256xbf16, #tpu.memory_space<vmem>>, vector<4x256xbf16>
    tpu.vector_store %arg9[%c12, %c0_16], %10 {strides = array<i32>} : memref<40x256xbf16, #tpu.memory_space<vmem>>, vector<4x256xbf16>,
    %c0_17 = arith.constant 0 : index
    %c0_18 = arith.constant 0 : index
    %c0_19 = arith.constant 0 : index
    %c19 = arith.constant 19 : index
    %12 = vector.load %arg2[%c0_17, %c0_18, %c0_19, %c19] : memref<1x1x4x384xbf16, #tpu.memory_space<vmem>>, vector<1x1x4x256xbf16>
    %13 = vector.shape_cast %12 : vector<1x1x4x256xbf16> to vector<4x256xbf16>
    %c16 = arith.constant 16 : index
    %c0_20 = arith.constant 0 : index
    %14 = vector.load %arg9[%c16, %c0_20] : memref<40x256xbf16, #tpu.memory_space<vmem>>, vector<4x256xbf16>
    tpu.vector_store %arg9[%c16, %c0_20], %13 {strides = array<i32>} : memref<40x256xbf16, #tpu.memory_space<vmem>>, vector<4x256xbf16>,
    %c0_21 = arith.constant 0 : index
    %c0_22 = arith.constant 0 : index
    %c0_23 = arith.constant 0 : index
    %c20 = arith.constant 20 : index
    %15 = vector.load %arg2[%c0_21, %c0_22, %c0_23, %c20] : memref<1x1x4x384xbf16, #tpu.memory_space<vmem>>, vector<1x1x4x256xbf16>
    %16 = vector.shape_cast %15 : vector<1x1x4x256xbf16> to vector<4x256xbf16>
    %c20_24 = arith.constant 20 : index
    %c0_25 = arith.constant 0 : index
    %17 = vector.load %arg9[%c20_24, %c0_25] : memref<40x256xbf16, #tpu.memory_space<vmem>>, vector<4x256xbf16>
    tpu.vector_store %arg9[%c20_24, %c0_25], %16 {strides = array<i32>} : memref<40x256xbf16, #tpu.memory_space<vmem>>, vector<4x256xbf16>,
    %c0_26 = arith.constant 0 : index
    %c0_27 = arith.constant 0 : index
    %c0_28 = arith.constant 0 : index
    %c36 = arith.constant 36 : index
    %18 = vector.load %arg2[%c0_26, %c0_27, %c0_28, %c36] : memref<1x1x4x384xbf16, #tpu.memory_space<vmem>>, vector<1x1x4x256xbf16>
    %19 = vector.shape_cast %18 : vector<1x1x4x256xbf16> to vector<4x256xbf16>
    %c24 = arith.constant 24 : index
    %c0_29 = arith.constant 0 : index
    %20 = vector.load %arg9[%c24, %c0_29] : memref<40x256xbf16, #tpu.memory_space<vmem>>, vector<4x256xbf16>
    tpu.vector_store %arg9[%c24, %c0_29], %19 {strides = array<i32>} : memref<40x256xbf16, #tpu.memory_space<vmem>>, vector<4x256xbf16>,
    %c0_30 = arith.constant 0 : index
    %c0_31 = arith.constant 0 : index
    %c0_32 = arith.constant 0 : index
    %c37 = arith.constant 37 : index
    %21 = vector.load %arg2[%c0_30, %c0_31, %c0_32, %c37] : memref<1x1x4x384xbf16, #tpu.memory_space<vmem>>, vector<1x1x4x256xbf16>
    %22 = vector.shape_cast %21 : vector<1x1x4x256xbf16> to vector<4x256xbf16>
    %c28 = arith.constant 28 : index
    %c0_33 = arith.constant 0 : index
    %23 = vector.load %arg9[%c28, %c0_33] : memref<40x256xbf16, #tpu.memory_space<vmem>>, vector<4x256xbf16>
    tpu.vector_store %arg9[%c28, %c0_33], %22 {strides = array<i32>} : memref<40x256xbf16, #tpu.memory_space<vmem>>, vector<4x256xbf16>,
    %c0_34 = arith.constant 0 : index
    %c0_35 = arith.constant 0 : index
    %c0_36 = arith.constant 0 : index
    %c38 = arith.constant 38 : index
    %24 = vector.load %arg2[%c0_34, %c0_35, %c0_36, %c38] : memref<1x1x4x384xbf16, #tpu.memory_space<vmem>>, vector<1x1x4x256xbf16>
    %25 = vector.shape_cast %24 : vector<1x1x4x256xbf16> to vector<4x256xbf16>
    %c32 = arith.constant 32 : index
    %c0_37 = arith.constant 0 : index
    %26 = vector.load %arg9[%c32, %c0_37] : memref<40x256xbf16, #tpu.memory_space<vmem>>, vector<4x256xbf16>
    tpu.vector_store %arg9[%c32, %c0_37], %25 {strides = array<i32>} : memref<40x256xbf16, #tpu.memory_space<vmem>>, vector<4x256xbf16>,
    %cst = arith.constant 0.000000e+00 : bf16
    %27 = vector.broadcast %cst : bf16 to vector<4x256xbf16>
    %c36_38 = arith.constant 36 : index
    %c0_39 = arith.constant 0 : index
    %28 = vector.load %arg9[%c36_38, %c0_39] : memref<40x256xbf16, #tpu.memory_space<vmem>>, vector<4x256xbf16>
    tpu.vector_store %arg9[%c36_38, %c0_39], %27 {strides = array<i32>} : memref<40x256xbf16, #tpu.memory_space<vmem>>, vector<4x256xbf16>,
    %c0_40 = arith.constant 0 : index
    %c0_41 = arith.constant 0 : index
    %29 = vector.load %arg3[%c0_40, %c0_41] : memref<32x40xbf16, #tpu.memory_space<vmem>>, vector<32x40xbf16>
    %c0_42 = arith.constant 0 : index
    %c0_43 = arith.constant 0 : index
    %30 = vector.load %arg9[%c0_42, %c0_43] : memref<40x256xbf16, #tpu.memory_space<vmem>>, vector<40x256xbf16>
    %cst_44 = arith.constant dense<0.000000e+00> : vector<32x256xf32>
    %31 = tpu.matmul %29, %30, %cst_44 {dimension_numbers = #tpu.dot_dimension_numbers<[1], [0], [0], [1], [0, 0, 1, 1], [], []>} : vector<32x40xbf16>, vector<40x256xbf16>, vector<32x256xf32> -> vector<32x256xf32>
    %c0_45 = arith.constant 0 : index
    %c0_46 = arith.constant 0 : index
    %32 = vector.load %arg4[%c0_45, %c0_46] : memref<32x1xf32, #tpu.memory_space<vmem>>, vector<32x1xf32>
    %33 = vector.broadcast %32 : vector<32x1xf32> to vector<32x256xf32>
    %34 = arith.addf %31, %33 : vector<32x256xf32>
    %cst_47 = arith.constant 0.000000e+00 : f32
    %35 = vector.broadcast %cst_47 : f32 to vector<32x256xf32>
    %36 = arith.maximumf %34, %35 : vector<32x256xf32>
    %c0_48 = arith.constant 0 : index
    %c0_49 = arith.constant 0 : index
    %37 = vector.load %arg5[%c0_48, %c0_49] : memref<24x32xbf16, #tpu.memory_space<vmem>>, vector<24x32xbf16>
    %38 = arith.truncf %36 : vector<32x256xf32> to vector<32x256xbf16>
    %cst_50 = arith.constant dense<0.000000e+00> : vector<24x256xf32>
    %39 = tpu.matmul %37, %38, %cst_50 {dimension_numbers = #tpu.dot_dimension_numbers<[1], [0], [0], [1], [0, 0, 1, 1], [], []>} : vector<24x32xbf16>, vector<32x256xbf16>, vector<24x256xf32> -> vector<24x256xf32>
    %c0_51 = arith.constant 0 : index
    %c0_52 = arith.constant 0 : index
    %40 = vector.load %arg6[%c0_51, %c0_52] : memref<24x1xf32, #tpu.memory_space<vmem>>, vector<24x1xf32>
    %41 = vector.broadcast %40 : vector<24x1xf32> to vector<24x256xf32>
    %42 = arith.addf %39, %41 : vector<24x256xf32>
    %43 = vector.extract_strided_slice %42 {offsets = [0, 0], sizes = [8, 256], strides = [1, 1]} : vector<24x256xf32> to vector<8x256xf32>
    %c0_53 = arith.constant 0 : index
    %c0_54 = arith.constant 0 : index
    %c0_55 = arith.constant 0 : index
    %44 = vector.load %arg7[%c0_53, %c0_54, %c0_55] : memref<1x8x256xf32, #tpu.memory_space<vmem>>, vector<1x8x256xf32>
    %45 = vector.shape_cast %44 : vector<1x8x256xf32> to vector<8x256xf32>
    %46 = vector.shape_cast %43 : vector<8x256xf32> to vector<1x8x256xf32>
    tpu.vector_store %arg7[%c0_53, %c0_54, %c0_55], %46 {strides = array<i32>} : memref<1x8x256xf32, #tpu.memory_space<vmem>>, vector<1x8x256xf32>,
    %47 = vector.extract_strided_slice %42 {offsets = [8, 0], sizes = [16, 256], strides = [1, 1]} : vector<24x256xf32> to vector<16x256xf32>
    %c0_56 = arith.constant 0 : index
    %c0_57 = arith.constant 0 : index
    %c0_58 = arith.constant 0 : index
    %48 = vector.load %arg8[%c0_56, %c0_57, %c0_58] : memref<1x16x256xf32, #tpu.memory_space<vmem>>, vector<1x16x256xf32>
    %49 = vector.shape_cast %48 : vector<1x16x256xf32> to vector<16x256xf32>
    %50 = vector.shape_cast %47 : vector<16x256xf32> to vector<1x16x256xf32>
    tpu.vector_store %arg8[%c0_56, %c0_57, %c0_58], %50 {strides = array<i32>} : memref<1x16x256xf32, #tpu.memory_space<vmem>>, vector<1x16x256xf32>,
    return
  }
  func.func @transform_0(%arg0: i32, %arg1: i32) -> (i32, i32, i32, i32) {
    %c0_i32 = arith.constant 0 : i32
    %c0_i32_0 = arith.constant 0 : i32
    %c0_i32_1 = arith.constant 0 : i32
    return %arg0, %arg1, %c0_i32, %c0_i32_0 : i32, i32, i32, i32
  }
  func.func @transform_1(%arg0: i32, %arg1: i32) -> (i32, i32) {
    %c0_i32 = arith.constant 0 : i32
    %c0_i32_0 = arith.constant 0 : i32
    %c0_i32_1 = arith.constant 0 : i32
    return %c0_i32, %c0_i32_0 : i32, i32
  }
  func.func @transform_2(%arg0: i32, %arg1: i32) -> (i32, i32) {
    %c0_i32 = arith.constant 0 : i32
    %c0_i32_0 = arith.constant 0 : i32
    %c0_i32_1 = arith.constant 0 : i32
    return %c0_i32, %c0_i32_0 : i32, i32
  }
  func.func @transform_3(%arg0: i32, %arg1: i32) -> (i32, i32) {
    %c0_i32 = arith.constant 0 : i32
    %c0_i32_0 = arith.constant 0 : i32
    %c0_i32_1 = arith.constant 0 : i32
    return %c0_i32, %c0_i32_0 : i32, i32
  }
  func.func @transform_4(%arg0: i32, %arg1: i32) -> (i32, i32) {
    %c0_i32 = arith.constant 0 : i32
    %c0_i32_0 = arith.constant 0 : i32
    %c0_i32_1 = arith.constant 0 : i32
    return %c0_i32, %c0_i32_0 : i32, i32
  }
  func.func @transform_5(%arg0: i32, %arg1: i32) -> (i32, i32, i32) {
    %c0_i32 = arith.constant 0 : i32
    %c0_i32_0 = arith.constant 0 : i32
    return %arg0, %c0_i32, %arg1 : i32, i32, i32
  }
  func.func @transform_6(%arg0: i32, %arg1: i32) -> (i32, i32, i32) {
    %c0_i32 = arith.constant 0 : i32
    %c0_i32_0 = arith.constant 0 : i32
    return %arg0, %c0_i32, %arg1 : i32, i32, i32
  }
}

</mosaic_0001>

<llo_original>
// kernel: rpn_forward.1
$region0: #{rpn_forward.1}
  #allocation0 [shape = 'u32[]', space=smem, size = 0x4, offset = 0x4, fixed_abs, tag = 'smem constant byte address 0x4 - core index']
  #allocation1 [shape = 'u32[144,128]{1,0:T(1,128)}', space=vmem, size = 0x12000, scoped, tag = 'internal scratch']
  #allocation2 [shape = 'bf16[40,256]{1,0:T(8,128)(2,1)}', space=vmem, size = 0x5000, scoped, tag = 'scratch operand']
  %s0 = inlined_call_operand.vmem [shape: bf16[2,2,4,384], index: 0, kind: input, shape index: {}]
  %s1 = inlined_call_operand.vmem [shape: bf16[32,40], index: 1, kind: input, shape index: {}]
  %s2 = inlined_call_operand.vmem [shape: f32[32,1], index: 2, kind: input, shape index: {}]
  %s3 = inlined_call_operand.vmem [shape: bf16[24,32], index: 3, kind: input, shape index: {}]
  %s4 = inlined_call_operand.vmem [shape: f32[24,1], index: 4, kind: input, shape index: {}]
  %s5 = inlined_call_operand.vmem [shape: f32[2,8,512], index: 5, kind: output, shape index: {0}]
  %s6 = inlined_call_operand.vmem [shape: f32[2,16,512], index: 6, kind: output, shape index: {1}]
  %7 = xla_tuple %s5, %s6
  %s8 = sld [smem:[#allocation0]]
  $region80: #{rpn_forward.1} parent=0
    _
  %s10 = ssub.s32 1, %s8
  %s11 = scalar_select 0, %s10, %s8
  $region1: #{rpn_forward.1} parent=0
    #allocation3 [shape = 'u8[32768]{0}', space=vmem, size = 0x8000, scoped, tag = 'output window, operand 1']
    loop: start=0, step=1, limit=6
    $region2: #{rpn_forward.1} parent=1 // loop_pre_header
      _
    $region3: #{rpn_forward.1} parent=1 // loop_header
      %s13 = sphi 0, %s17
      %p14 = scmp.ge.s32.totalorder %s13, 6
      %s20 = sphi 0, %s32
      %s21 = sphi 0, %s28
      %s22 = sphi 0, %s20
      %s23 = sphi 0, %s21
      %s24 = sphi 0, %s22
      %s25 = sphi 0, %s23
      %s37 = sphi 0, %s39
      %s40 = sphi 0, %s37
      %s41 = sphi 0, %s40
      %s57 = sphi 0, %s41
      %s61 = sphi 0, %s61
      %s63 = sphi 0, %s61
      %s64 = sphi 0, %s63
      %s78 = sphi 0, %s64
      %s82 = sphi 0, %s82
      %s84 = sphi 0, %s82
      %s85 = sphi 0, %s84
      %s99 = sphi 0, %s85
      %s103 = sphi 0, %s103
      %s105 = sphi 0, %s103
      %s106 = sphi 0, %s105
      %s120 = sphi 0, %s106
      %s124 = sphi 0, %s124
      %s126 = sphi 0, %s124
      %s127 = sphi 0, %s126
      %s141 = sphi 0, %s127
      %s149 = sphi 0, %s151
      %s152 = sphi 0, %s149
      %s153 = sphi 0, %s152
      %s169 = sphi 0, %s153
      %s177 = sphi 0, %s179
      %s180 = sphi 0, %s177
      %s181 = sphi 0, %s180
      %s197 = sphi 0, %s181
    $region4: #{rpn_forward.1} parent=1 // loop_header_branch
      %16 = sbr.rel (%p14) target = $region8
    $region5: #{rpn_forward.1} parent=1 // loop_body
      %s18 = ssub.s32 %s13, 1
      %s19 = ssub.s32 %s13, 2
      %s26 = sadd.s32 1, %s21
      %p27 = scmp.ge.s32.totalorder %s26, 2
      %s28 = scalar_select %p27, 0, %s26
      %s29 = sadd.s32 1, %s20
      %s30 = scalar_select %p27, %s29, %s20
      %p31 = scmp.ge.s32.totalorder %s30, 2
      %s32 = scalar_select %p31, 0, %s30
      %s33 = ssub.s32 %s20, %s32
      %s34 = ssub.s32 %s21, %s28
      %s35 = sor.u32 %s33, %s34
      %p36 = scmp.eq.s32.totalorder %s35, 0
      %s38 = sadd.s32 %s37, 1
      %s39 = scalar_select %p36, %s37, %s38
      %p42 = pneg %p36
      %p43 = scmp.eq.s32.totalorder %s13, 3
      %p44 = por %p42, %p43
      %p45 = scmp.ne.s32.totalorder %s37, %s40
      %p46 = scmp.eq.s32.totalorder %s13, 0
      %p47 = por %p45, %p46
      %p48 = scmp.ne.s32.totalorder %s37, %s40
      %p49 = scmp.eq.s32.totalorder %s18, 3
      %p50 = por %p48, %p49
      %p51 = scmp.ne.s32.totalorder %s40, %s41
      %p52 = scmp.eq.s32.totalorder %s18, 0
      %p53 = por %p51, %p52
      %p54 = scmp.ne.s32.totalorder %s40, %s41
      %p55 = scmp.eq.s32.totalorder %s19, 3
      %p56 = por %p54, %p55
      %p58 = scmp.ne.s32.totalorder %s41, %s57
      %p59 = scmp.eq.s32.totalorder %s19, 0
      %p60 = por %p58, %p59
      %s62 = sadd.s32 %s61, 1
      %p65 = scmp.eq.s32.totalorder %s13, 3
      %p66 = scmp.ne.s32.totalorder %s61, %s63
      %p67 = scmp.eq.s32.totalorder %s13, 0
      %p68 = por %p66, %p67
      %p69 = scmp.ne.s32.totalorder %s61, %s63
      %p70 = scmp.eq.s32.totalorder %s18, 3
      %p71 = por %p69, %p70
      %p72 = scmp.ne.s32.totalorder %s63, %s64
      %p73 = scmp.eq.s32.totalorder %s18, 0
      %p74 = por %p72, %p73
      %p75 = scmp.ne.s32.totalorder %s63, %s64
      %p76 = scmp.eq.s32.totalorder %s19, 3
      %p77 = por %p75, %p76
      %p79 = scmp.ne.s32.totalorder %s64, %s78
      %p80 = scmp.eq.s32.totalorder %s19, 0
      %p81 = por %p79, %p80
      %s83 = sadd.s32 %s82, 1
      %p86 = scmp.eq.s32.totalorder %s13, 3
      %p87 = scmp.ne.s32.totalorder %s82, %s84
      %p88 = scmp.eq.s32.totalorder %s13, 0
      %p89 = por %p87, %p88
      %p90 = scmp.ne.s32.totalorder %s82, %s84
      %p91 = scmp.eq.s32.totalorder %s18, 3
      %p92 = por %p90, %p91
      %p93 = scmp.ne.s32.totalorder %s84, %s85
      %p94 = scmp.eq.s32.totalorder %s18, 0
      %p95 = por %p93, %p94
      %p96 = scmp.ne.s32.totalorder %s84, %s85
      %p97 = scmp.eq.s32.totalorder %s19, 3
      %p98 = por %p96, %p97
      %p100 = scmp.ne.s32.totalorder %s85, %s99
      %p101 = scmp.eq.s32.totalorder %s19, 0
      %p102 = por %p100, %p101
      %s104 = sadd.s32 %s103, 1
      %p107 = scmp.eq.s32.totalorder %s13, 3
      %p108 = scmp.ne.s32.totalorder %s103, %s105
      %p109 = scmp.eq.s32.totalorder %s13, 0
      %p110 = por %p108, %p109
      %p111 = scmp.ne.s32.totalorder %s103, %s105
      %p112 = scmp.eq.s32.totalorder %s18, 3
      %p113 = por %p111, %p112
      %p114 = scmp.ne.s32.totalorder %s105, %s106
      %p115 = scmp.eq.s32.totalorder %s18, 0
      %p116 = por %p114, %p115
      %p117 = scmp.ne.s32.totalorder %s105, %s106
      %p118 = scmp.eq.s32.totalorder %s19, 3
      %p119 = por %p117, %p118
      %p121 = scmp.ne.s32.totalorder %s106, %s120
      %p122 = scmp.eq.s32.totalorder %s19, 0
      %p123 = por %p121, %p122
      %s125 = sadd.s32 %s124, 1
      %p128 = scmp.eq.s32.totalorder %s13, 3
      %p129 = scmp.ne.s32.totalorder %s124, %s126
      %p130 = scmp.eq.s32.totalorder %s13, 0
      %p131 = por %p129, %p130
      %p132 = scmp.ne.s32.totalorder %s124, %s126
      %p133 = scmp.eq.s32.totalorder %s18, 3
      %p134 = por %p132, %p133
      %p135 = scmp.ne.s32.totalorder %s126, %s127
      %p136 = scmp.eq.s32.totalorder %s18, 0
      %p137 = por %p135, %p136
      %p138 = scmp.ne.s32.totalorder %s126, %s127
      %p139 = scmp.eq.s32.totalorder %s19, 3
      %p140 = por %p138, %p139
      %p142 = scmp.ne.s32.totalorder %s127, %s141
      %p143 = scmp.eq.s32.totalorder %s19, 0
      %p144 = por %p142, %p143
      %s145 = ssub.s32 %s20, %s32
      %s146 = ssub.s32 %s21, %s28
      %s147 = sor.u32 %s145, %s146
      %p148 = scmp.eq.s32.totalorder %s147, 0
      %s150 = sadd.s32 %s149, 1
      %s151 = scalar_select %p148, %s149, %s150
      %p154 = pneg %p148
      %p155 = scmp.eq.s32.totalorder %s13, 3
      %p156 = por %p154, %p155
      %p157 = scmp.ne.s32.totalorder %s149, %s152
      %p158 = scmp.eq.s32.totalorder %s13, 0
      %p159 = por %p157, %p158
      %p160 = scmp.ne.s32.totalorder %s149, %s152
      %p161 = scmp.eq.s32.totalorder %s18, 3
      %p162 = por %p160, %p161
      %p163 = scmp.ne.s32.totalorder %s152, %s153
      %p164 = scmp.eq.s32.totalorder %s18, 0
      %p165 = por %p163, %p164
      %p166 = scmp.ne.s32.totalorder %s152, %s153
      %p167 = scmp.eq.s32.totalorder %s19, 3
      %p168 = por %p166, %p167
      %p170 = scmp.ne.s32.totalorder %s153, %s169
      %p171 = scmp.eq.s32.totalorder %s19, 0
      %p172 = por %p170, %p171
      %s173 = ssub.s32 %s20, %s32
      %s174 = ssub.s32 %s21, %s28
      %s175 = sor.u32 %s173, %s174
      %p176 = scmp.eq.s32.totalorder %s175, 0
      %s178 = sadd.s32 %s177, 1
      %s179 = scalar_select %p176, %s177, %s178
      %p182 = pneg %p176
      %p183 = scmp.eq.s32.totalorder %s13, 3
      %p184 = por %p182, %p183
      %p185 = scmp.ne.s32.totalorder %s177, %s180
      %p186 = scmp.eq.s32.totalorder %s13, 0
      %p187 = por %p185, %p186
      %p188 = scmp.ne.s32.totalorder %s177, %s180
      %p189 = scmp.eq.s32.totalorder %s18, 3
      %p190 = por %p188, %p189
      %p191 = scmp.ne.s32.totalorder %s180, %s181
      %p192 = scmp.eq.s32.totalorder %s18, 0
      %p193 = por %p191, %p192
      %p194 = scmp.ne.s32.totalorder %s180, %s181
      %p195 = scmp.eq.s32.totalorder %s19, 3
      %p196 = por %p194, %p195
      %p198 = scmp.ne.s32.totalorder %s181, %s197
      %p199 = scmp.eq.s32.totalorder %s19, 0
      %p200 = por %p198, %p199
      %p201 = scmp.le.s32.totalorder 1, %s13
      %p202 = scmp.lt.s32.totalorder %s13, 5
      %p203 = pnand %p201, %p202
      %p204 = pneg %p203
      // Predicated region
      $region9: #{rpn_forward.1} parent=5 // pred_check
        _
      $region10: #{rpn_forward.1} parent=5 // pred_check_branch
        %206 = sbr.rel (%p203) target = $region12
      $region11: #{rpn_forward.1} parent=5 // pred_region
        %s207 = ssub.s32 %s13, 1
        // Predicated region
        $region13: #{rpn_forward.1} parent=11 // pred_check
          %p208 = pneg %p74
        $region14: #{rpn_forward.1} parent=11 // pred_check_branch
          %210 = sbr.rel (%p208) target = $region16
        $region15: #{rpn_forward.1} parent=11 // pred_region
          _
        $region16: #{rpn_forward.1} parent=11 // pred_fallthru
          _
        // Predicated region
        $region17: #{rpn_forward.1} parent=11 // pred_check
          %p211 = pneg %p95
        $region18: #{rpn_forward.1} parent=11 // pred_check_branch
          %213 = sbr.rel (%p211) target = $region20
        $region19: #{rpn_forward.1} parent=11 // pred_region
          _
        $region20: #{rpn_forward.1} parent=11 // pred_fallthru
          _
        // Predicated region
        $region21: #{rpn_forward.1} parent=11 // pred_check
          %p214 = pneg %p116
        $region22: #{rpn_forward.1} parent=11 // pred_check_branch
          %216 = sbr.rel (%p214) target = $region24
        $region23: #{rpn_forward.1} parent=11 // pred_region
          _
        $region24: #{rpn_forward.1} parent=11 // pred_fallthru
          _
        // Predicated region
        $region25: #{rpn_forward.1} parent=11 // pred_check
          %p217 = pneg %p137
        $region26: #{rpn_forward.1} parent=11 // pred_check_branch
          %219 = sbr.rel (%p217) target = $region28
        $region27: #{rpn_forward.1} parent=11 // pred_region
          _
        $region28: #{rpn_forward.1} parent=11 // pred_fallthru
          _
      $region12: #{rpn_forward.1} parent=5 // pred_fallthru
        _
      %p220 = scmp.lt.s32.totalorder %s13, 4
      // Predicated region
      $region29: #{rpn_forward.1} parent=5 // pred_check
        %p221 = pneg %p220
      $region30: #{rpn_forward.1} parent=5 // pred_check_branch
        %223 = sbr.rel (%p221) target = $region32
      $region31: #{rpn_forward.1} parent=5 // pred_region
        // Predicated region
        $region33: #{rpn_forward.1} parent=31 // pred_check
          %p224 = pneg %p47
        $region34: #{rpn_forward.1} parent=31 // pred_check_branch
          %226 = sbr.rel (%p224) target = $region36
        $region35: #{rpn_forward.1} parent=31 // pred_region
          %p227 = scmp.lt.s32.totalorder %s20, 1
          %s228 = scalar_select %p227, %s20, 1
          %p229 = scmp.lt.s32.totalorder %s21, 1
          %s230 = scalar_select %p229, %s21, 1
          %s231 = smul.addr %s230, 3
          %s232 = smul.addr %s228, 6
          %s233 = sadd.s32 %s231, %s232
          %s234 = smul.addr %s233, 2
          %s235 = scalar_lea.vmem %s0, %s234
        $region36: #{rpn_forward.1} parent=31 // pred_fallthru
          _
      $region32: #{rpn_forward.1} parent=5 // pred_fallthru
        _
      %p236 = scmp.le.s32.totalorder 1, %s13
      %p237 = scmp.lt.s32.totalorder %s13, 5
      %p238 = pnand %p236, %p237
      %p239 = pneg %p238
      // Predicated region
      $region37: #{rpn_forward.1} parent=5 // pred_check
        _
      $region38: #{rpn_forward.1} parent=5 // pred_check_branch
        %241 = sbr.rel (%p238) target = $region40
      $region39: #{rpn_forward.1} parent=5 // pred_region
        %s242 = ssub.s32 %s13, 1
        %p243 = scmp.lt.s32.totalorder %s22, 1
        %s244 = scalar_select %p243, %s22, 1
        %p245 = scmp.lt.s32.totalorder %s23, 1
        %s246 = scalar_select %p245, %s23, 1
        %s247 = smul.addr %s246, 3
        %s248 = smul.addr %s244, 6
        %s249 = sadd.s32 %s247, %s248
        %s250 = smul.addr %s249, 2
        %s251 = scalar_lea.vmem %s0, %s250
        %p252 = pneg %p53
        %p253 = pneg %p50
        %p254 = pneg %p74
        %p255 = pneg %p71
        %p256 = pneg %p95
        %p257 = pneg %p92
        %p258 = pneg %p116
        %p259 = pneg %p113
        %p260 = pneg %p137
        %p261 = pneg %p134
        %p262 = pneg %p165
        %p263 = pneg %p162
        %s264 = smul.u32 2, %s23
        %p265 = scmp.lt.s32.totalorder %s22, 1
        %s266 = scalar_select %p265, %s22, 1
        %p267 = scmp.lt.s32.totalorder %s264, 3
        %s268 = scalar_select %p267, %s264, 3
        %s269 = smul.addr %s266, 4
        %s270 = sadd.s32 %s268, %s269
        %s271 = smul.addr %s270, 8
        %s272 = scalar_lea.vmem %s5, %s271
        %p273 = pneg %p193
        %p274 = pneg %p190
        %s275 = sand.u32 %s180, 1
        %s276 = sand.u32 %s180, 1
        %s277 = smul.addr %s276, 32
        %s278 = scalar_lea.vmem [#allocation3], %s277
        %p279 = scmp.lt.s32.totalorder %s22, 1
        %s280 = scalar_select %p279, %s22, 1
        %p281 = scmp.lt.s32.totalorder %s23, 1
        %s282 = scalar_select %p281, %s23, 1
        %s283 = smul.addr %s282, 3
        %s284 = smul.addr %s280, 6
        %s285 = sadd.s32 %s283, %s284
        %s286 = smul.addr %s285, 2
        %s287 = scalar_lea.vmem %s0, %s286
        %s288 = smul.u32 2, %s23
        %p289 = scmp.lt.s32.totalorder %s22, 1
        %s290 = scalar_select %p289, %s22, 1
        %p291 = scmp.lt.s32.totalorder %s288, 3
        %s292 = scalar_select %p291, %s288, 3
        %s293 = smul.addr %s290, 4
        %s294 = sadd.s32 %s292, %s293
        %s295 = smul.addr %s294, 8
        %s296 = scalar_lea.vmem %s5, %s295
        %s297 = smul.u32 2, %s23
        %s298 = smul.u32 2, %s23
        %v300 = vld [vmem:[%s287] sm:$0xf]
        %v303 = vunpack.c.l.s4 1983009808
        %v304 = vunpack.c.0.s8 %v303
        %v305 = vlaneseq
        %v306 = vshrl.u32 %v305, 7
        %v307 = vsub.s32 %v304, %v306
        %v308 = vrot.slane %v300, %v307
        %310 = vst [vmem:[#allocation2] sm:$0x33] %v308
        %v311 = vld [vmem:[%s287] sm:$0x3f]
        %v313 = vcombine.low %v311, %v311
        %v315 = vunpack.c.l.s4 1983009808
        %v316 = vunpack.c.0.s8 %v315
        %v317 = vlaneseq
        %v318 = vshrl.u32 %v317, 7
        %v319 = vsub.s32 %v316, %v318
        %v320 = vrot.slane %v313, %v319
        %v322 = vunpack.c.l.s4 1983009808
        %v323 = vunpack.c.0.s8 %v322
        %v324 = vlaneseq
        %v325 = vshrl.u32 %v324, 7
        %v326 = vsub.s32 %v323, %v325
        %v327 = vrot.slane %v311, %v326
        %328 = vrot.lane.b32.xlu0 %v320, 127
        %v329 = vpop.permute.xlu0 %328
        %330 = vrot.lane.b32.xlu0 %v327, 127
        %v331 = vpop.permute.xlu0 %330
        %v332 = vrot.slane %v329, 4
        %v333 = vrot.slane %v331, 4
        %vm334 = vcmask 1043456
        %v335 = vsel %vm334, %v332, %v333
        %vm336 = vcmask 1039360
        %v337 = vsel %vm336, %v329, %v335
        %339 = vst [vmem:[#allocation2] sm:$0xcc] %v337
        %v340 = vld [vmem:[%s287] sm:$0x3f]
        %v342 = vcombine.high %v340, %v340
        %v344 = vunpack.c.l.s4 1983009808
        %v345 = vunpack.c.0.s8 %v344
        %v346 = vlaneseq
        %v347 = vshrl.u32 %v346, 7
        %v348 = vsub.s32 %v345, %v347
        %v349 = vrot.slane %v340, %v348
        %v351 = vunpack.c.l.s4 1983009808
        %v352 = vunpack.c.0.s8 %v351
        %v353 = vlaneseq
        %v354 = vshrl.u32 %v353, 7
        %v355 = vsub.s32 %v352, %v354
        %v356 = vrot.slane %v342, %v355
        %357 = vrot.lane.b32.xlu0 %v349, 126
        %v358 = vpop.permute.xlu0 %357
        %359 = vrot.lane.b32.xlu0 %v356, 126
        %v360 = vpop.permute.xlu0 %359
        %v361 = vrot.slane %v358, 4
        %v362 = vrot.slane %v360, 4
        %v363 = vsel %vm334, %v361, %v362
        %vm364 = vcmask 1031168
        %v365 = vsel %vm364, %v358, %v363
        %367 = vst [vmem:[#allocation2 + $0x8] sm:$0x33] %v365
        %v368 = vld [vmem:[%s287] sm:$0x3f]
        %v370 = vcombine.low %v368, %v368
        %v372 = vunpack.c.l.s4 1983009808
        %v373 = vunpack.c.0.s8 %v372
        %v374 = vlaneseq
        %v375 = vshrl.u32 %v374, 7
        %v376 = vsub.s32 %v373, %v375
        %v377 = vrot.slane %v370, %v376
        %v379 = vunpack.c.l.s4 1983009808
        %v380 = vunpack.c.0.s8 %v379
        %v381 = vlaneseq
        %v382 = vshrl.u32 %v381, 7
        %v383 = vsub.s32 %v380, %v382
        %v384 = vrot.slane %v368, %v383
        %385 = vrot.lane.b32.xlu0 %v377, 110
        %v386 = vpop.permute.xlu0 %385
        %387 = vrot.lane.b32.xlu0 %v384, 110
        %v388 = vpop.permute.xlu0 %387
        %v389 = vrot.slane %v386, 4
        %v390 = vrot.slane %v388, 4
        %v391 = vsel %vm334, %v389, %v390
        %vm392 = vcmask 900096
        %v393 = vsel %vm392, %v386, %v391
        %395 = vst [vmem:[#allocation2 + $0x8] sm:$0xcc] %v393
        %v396 = vld [vmem:[%s287] sm:$0x3f]
        %v398 = vcombine.high %v396, %v396
        %v400 = vunpack.c.l.s4 1983009808
        %v401 = vunpack.c.0.s8 %v400
        %v402 = vlaneseq
        %v403 = vshrl.u32 %v402, 7
        %v404 = vsub.s32 %v401, %v403
        %v405 = vrot.slane %v396, %v404
        %v407 = vunpack.c.l.s4 1983009808
        %v408 = vunpack.c.0.s8 %v407
        %v409 = vlaneseq
        %v410 = vshrl.u32 %v409, 7
        %v411 = vsub.s32 %v408, %v410
        %v412 = vrot.slane %v398, %v411
        %413 = vrot.lane.b32.xlu0 %v405, 109
        %v414 = vpop.permute.xlu0 %413
        %415 = vrot.lane.b32.xlu0 %v412, 109
        %v416 = vpop.permute.xlu0 %415
        %v417 = vrot.slane %v414, 4
        %v418 = vrot.slane %v416, 4
        %v419 = vsel %vm334, %v417, %v418
        %vm420 = vcmask 891904
        %v421 = vsel %vm420, %v414, %v419
        %423 = vst [vmem:[#allocation2 + $0x10] sm:$0x33] %v421
        %v424 = vld [vmem:[%s287] sm:$0x3f]
        %v426 = vcombine.low %v424, %v424
        %v428 = vunpack.c.l.s4 1983009808
        %v429 = vunpack.c.0.s8 %v428
        %v430 = vlaneseq
        %v431 = vshrl.u32 %v430, 7
        %v432 = vsub.s32 %v429, %v431
        %v433 = vrot.slane %v426, %v432
        %v435 = vunpack.c.l.s4 1983009808
        %v436 = vunpack.c.0.s8 %v435
        %v437 = vlaneseq
        %v438 = vshrl.u32 %v437, 7
        %v439 = vsub.s32 %v436, %v438
        %v440 = vrot.slane %v424, %v439
        %441 = vrot.lane.b32.xlu0 %v433, 108
        %v442 = vpop.permute.xlu0 %441
        %443 = vrot.lane.b32.xlu0 %v440, 108
        %v444 = vpop.permute.xlu0 %443
        %v445 = vrot.slane %v442, 4
        %v446 = vrot.slane %v444, 4
        %v447 = vsel %vm334, %v445, %v446
        %vm448 = vcmask 883712
        %v449 = vsel %vm448, %v442, %v447
        %451 = vst [vmem:[#allocation2 + $0x10] sm:$0xcc] %v449
        %v452 = vld [vmem:[%s287] sm:$0x3f]
        %v454 = vcombine.high %v452, %v452
        %v456 = vunpack.c.l.s4 1983009808
        %v457 = vunpack.c.0.s8 %v456
        %v458 = vlaneseq
        %v459 = vshrl.u32 %v458, 7
        %v460 = vsub.s32 %v457, %v459
        %v461 = vrot.slane %v452, %v460
        %v463 = vunpack.c.l.s4 1983009808
        %v464 = vunpack.c.0.s8 %v463
        %v465 = vlaneseq
        %v466 = vshrl.u32 %v465, 7
        %v467 = vsub.s32 %v464, %v466
        %v468 = vrot.slane %v454, %v467
        %469 = vrot.lane.b32.xlu0 %v461, 92
        %v470 = vpop.permute.xlu0 %469
        %471 = vrot.lane.b32.xlu0 %v468, 92
        %v472 = vpop.permute.xlu0 %471
        %v473 = vrot.slane %v470, 4
        %v474 = vrot.slane %v472, 4
        %v475 = vsel %vm334, %v473, %v474
        %vm476 = vcmask 752640
        %v477 = vsel %vm476, %v470, %v475
        %479 = vst [vmem:[#allocation2 + $0x18] sm:$0x33] %v477
        %v480 = vld [vmem:[%s287] sm:$0x3f]
        %v482 = vcombine.low %v480, %v480
        %v484 = vunpack.c.l.s4 1983009808
        %v485 = vunpack.c.0.s8 %v484
        %v486 = vlaneseq
        %v487 = vshrl.u32 %v486, 7
        %v488 = vsub.s32 %v485, %v487
        %v489 = vrot.slane %v482, %v488
        %v491 = vunpack.c.l.s4 1983009808
        %v492 = vunpack.c.0.s8 %v491
        %v493 = vlaneseq
        %v494 = vshrl.u32 %v493, 7
        %v495 = vsub.s32 %v492, %v494
        %v496 = vrot.slane %v480, %v495
        %497 = vrot.lane.b32.xlu0 %v489, 91
        %v498 = vpop.permute.xlu0 %497
        %499 = vrot.lane.b32.xlu0 %v496, 91
        %v500 = vpop.permute.xlu0 %499
        %v501 = vrot.slane %v498, 4
        %v502 = vrot.slane %v500, 4
        %v503 = vsel %vm334, %v501, %v502
        %vm504 = vcmask 744448
        %v505 = vsel %vm504, %v498, %v503
        %507 = vst [vmem:[#allocation2 + $0x18] sm:$0xcc] %v505
        %v508 = vld [vmem:[%s287] sm:$0x3f]
        %v510 = vcombine.high %v508, %v508
        %v512 = vunpack.c.l.s4 1983009808
        %v513 = vunpack.c.0.s8 %v512
        %v514 = vlaneseq
        %v515 = vshrl.u32 %v514, 7
        %v516 = vsub.s32 %v513, %v515
        %v517 = vrot.slane %v508, %v516
        %v519 = vunpack.c.l.s4 1983009808
        %v520 = vunpack.c.0.s8 %v519
        %v521 = vlaneseq
        %v522 = vshrl.u32 %v521, 7
        %v523 = vsub.s32 %v520, %v522
        %v524 = vrot.slane %v510, %v523
        %525 = vrot.lane.b32.xlu0 %v517, 90
        %v526 = vpop.permute.xlu0 %525
        %527 = vrot.lane.b32.xlu0 %v524, 90
        %v528 = vpop.permute.xlu0 %527
        %v529 = vrot.slane %v526, 4
        %v530 = vrot.slane %v528, 4
        %v531 = vsel %vm334, %v529, %v530
        %vm532 = vcmask 736256
        %v533 = vsel %vm532, %v526, %v531
        %535 = vst [vmem:[#allocation2 + $0x20] sm:$0x33] %v533
        %536 = vst [vmem:[#allocation2 + $0x20] sm:$0xcc] 0
        %v537 = vld [vmem:[%s1] sm:$0xf]
        %v538 = vld [vmem:[%s1 + $0x4] sm:$0xf]
        %v539 = vld [vmem:[%s1 + $0x8] sm:$0xf]
        %v540 = vld [vmem:[%s1 + $0xc] sm:$0xf]
        %v541 = vld [vmem:[#allocation2] sm:$0xff]
        %v542 = vld [vmem:[#allocation2 + $0x8] sm:$0xff]
        %v543 = vld [vmem:[#allocation2 + $0x10] sm:$0xff]
        %v544 = vld [vmem:[#allocation2 + $0x18] sm:$0xff]
        %v545 = vld [vmem:[#allocation2 + $0x20] sm:$0xff]
        %v546 = vld [vmem:[%s2] sm:$0xff]
        %v547 = vld [vmem:[%s2 + $0x8] sm:$0xff]
        %v548 = vld [vmem:[%s2 + $0x10] sm:$0xff]
        %v549 = vld [vmem:[%s2 + $0x18] sm:$0xff]
        %551 = vset.pattern.permute.xlu0 0
        %552 = vperm.xlu0 %551, %v546
        %v553 = vpop.permute.xlu0 %552
        %556 = vset.pattern.permute.xlu0 0
        %557 = vperm.xlu0 %556, %v547
        %v558 = vpop.permute.xlu0 %557
        %561 = vset.pattern.permute.xlu0 0
        %562 = vperm.xlu0 %561, %v548
        %v563 = vpop.permute.xlu0 %562
        %566 = vset.pattern.permute.xlu0 0
        %567 = vperm.xlu0 %566, %v549
        %v568 = vpop.permute.xlu0 %567
        %v574 = vunpack.c.l.b16 %v537
        %v575 = vunpack.c.l.b16 %v538
        %v576 = vunpack.c.l.b16 %v539
        %v577 = vunpack.c.l.b16 %v540
        %v578 = vpack.c.b16 %v575, %v574
        %v579 = vpack.c.b16 %v577, %v576
        %v585 = vunpack.c.l.b16 %v541
        %v586 = vunpack.c.h.b16 %v541
        %v587 = vunpack.c.l.b16 %v542
        %v588 = vunpack.c.h.b16 %v542
        %v589 = vunpack.c.l.b16 %v543
        %v590 = vunpack.c.h.b16 %v543
        %v591 = vunpack.c.l.b16 %v544
        %v592 = vunpack.c.h.b16 %v544
        %v593 = vunpack.c.l.b16 %v545
        %v594 = vunpack.c.h.b16 %v545
        %v595 = vpack.c.b16 %v587, %v585
        %v596 = vpack.c.b16 %v588, %v586
        %v597 = vpack.c.b16 %v591, %v589
        %v598 = vpack.c.b16 %v592, %v590
        %v599 = vpack.c.b16 %v593, %v593
        %v600 = vpack.c.b16 %v594, %v594
        %vm605 = vcmask 326656
        %v607 = vsel %vm605, %v578, 0
        %v610 = vsel %vm605, %v579, 0
        %vm612 = vcmask 1043456
        %v614 = vsel %vm612, %v599, 0
        %v617 = vsel %vm612, %v600, 0
        %619 = vmatprep.subr.bf16.mxu0 %v596
        %620 = vmatpush1.bf16.msra.mxu0 %v595
        %621 = vmatprep.subr.bf16.mxu0 %v598
        %622 = vmatpush1.bf16.msra.mxu0 %v597
        %623 = vmatprep.subr.bf16.mxu0 %v617
        %624 = vmatpush1.bf16.msra.mxu0 %v614
        %625 = vmatprep.subr.bf16.mxu0 0
        %626 = vmatpush1.bf16.msra.mxu0 0
        %627 = vmatprep.subr.bf16.mxu0 0
        %628 = vmatpush1.bf16.msra.mxu0 0
        %629 = vmatprep.subr.bf16.mxu0 0
        %630 = vmatpush1.bf16.msra.mxu0 0
        %631 = vmatprep.subr.bf16.mxu0 0
        %632 = vmatpush1.bf16.msra.mxu0 0
        %633 = vmatprep.subr.bf16.mxu0 0
        %634 = vmatpush1.bf16.msra.mxu0 0
        %635 = vmatprep.subr.bf16.mxu0 0
        %636 = vmatpush1.bf16.msra.mxu0 0
        %637 = vmatprep.subr.bf16.mxu0 0
        %638 = vmatpush1.bf16.msra.mxu0 0
        %639 = vmatprep.subr.bf16.mxu0 0
        %640 = vmatpush1.bf16.msra.mxu0 0
        %641 = vmatprep.subr.bf16.mxu0 0
        %642 = vmatpush1.bf16.msra.mxu0 0
        %643 = vmatprep.subr.bf16.mxu0 0
        %644 = vmatpush1.bf16.msra.mxu0 0
        %645 = vmatprep.subr.bf16.mxu0 0
        %646 = vmatpush1.bf16.msra.mxu0 0
        %647 = vmatprep.subr.bf16.mxu0 0
        %648 = vmatpush1.bf16.msra.mxu0 0
        %649 = vmatprep.subr.bf16.mxu0 0
        %650 = vmatpush1.bf16.msra.mxu0 0
        %651 = vmatprep.mubr.bf16.mxu0 0
        %652 = vmatmul.mubr.bf16.gmra.mrb[0].mxu0 %v607
        %v653 = vpop.f32.mrb[0].mxu0
        %v654 = vadd.f32 %v553, %v653
        %v655 = vpop.f32.mrb[0].mxu0
        %v656 = vadd.f32 %v553, %v655
        %v657 = vpop.f32.mrb[0].mxu0
        %v658 = vadd.f32 %v558, %v657
        %v659 = vpop.f32.mrb[0].mxu0
        %v660 = vadd.f32 %v558, %v659
        %661 = vmatprep.mubr.bf16.mxu0 0
        %662 = vmatmul.mubr.bf16.gmra.mrb[0].mxu0 %v610
        %v663 = vpop.f32.mrb[0].mxu0
        %v664 = vadd.f32 %v563, %v663
        %v665 = vpop.f32.mrb[0].mxu0
        %v666 = vadd.f32 %v563, %v665
        %v667 = vpop.f32.mrb[0].mxu0
        %v668 = vadd.f32 %v568, %v667
        %v669 = vpop.f32.mrb[0].mxu0
        %v670 = vadd.f32 %v568, %v669
        %671 = vdwg.mxu0
        %v672 = vmax.f32 %v654, 0.0
        %v673 = vmax.f32 %v656, 0.0
        %v674 = vmax.f32 %v658, 0.0
        %v675 = vmax.f32 %v660, 0.0
        %v676 = vmax.f32 %v664, 0.0
        %v677 = vmax.f32 %v666, 0.0
        %v678 = vmax.f32 %v668, 0.0
        %v679 = vmax.f32 %v670, 0.0
        %v680 = vld [vmem:[%s3] sm:$0xf]
        %v681 = vld [vmem:[%s3 + $0x4] sm:$0xf]
        %v682 = vld [vmem:[%s3 + $0x8] sm:$0xf]
        %v683 = vpack.c.bf16 %v674, %v672
        %v684 = vpack.c.bf16 %v675, %v673
        %v685 = vpack.c.bf16 %v678, %v676
        %v686 = vpack.c.bf16 %v679, %v677
        %v687 = vld [vmem:[%s4] sm:$0xff]
        %v688 = vld [vmem:[%s4 + $0x8] sm:$0xff]
        %v689 = vld [vmem:[%s4 + $0x10] sm:$0xff]
        %691 = vset.pattern.permute.xlu0 0
        %692 = vperm.xlu0 %691, %v687
        %v693 = vpop.permute.xlu0 %692
        %696 = vset.pattern.permute.xlu0 0
        %697 = vperm.xlu0 %696, %v688
        %v698 = vpop.permute.xlu0 %697
        %701 = vset.pattern.permute.xlu0 0
        %702 = vperm.xlu0 %701, %v689
        %v703 = vpop.permute.xlu0 %702
        %v708 = vunpack.c.l.b16 %v680
        %v709 = vunpack.c.l.b16 %v681
        %v710 = vunpack.c.l.b16 %v682
        %v711 = vpack.c.b16 %v709, %v708
        %v712 = vpack.c.b16 %v710, %v710
        %vm713 = vcmask 261120
        %v715 = vsel %vm713, %v711, 0
        %v718 = vsel %vm713, %v712, 0
        %720 = vmatprep.subr.bf16.mxu0 %v684
        %721 = vmatpush1.bf16.msra.mxu0 %v683
        %722 = vmatprep.subr.bf16.mxu0 %v686
        %723 = vmatpush1.bf16.msra.mxu0 %v685
        %724 = vmatprep.subr.bf16.mxu0 0
        %725 = vmatpush1.bf16.msra.mxu0 0
        %726 = vmatprep.subr.bf16.mxu0 0
        %727 = vmatpush1.bf16.msra.mxu0 0
        %728 = vmatprep.subr.bf16.mxu0 0
        %729 = vmatpush1.bf16.msra.mxu0 0
        %730 = vmatprep.subr.bf16.mxu0 0
        %731 = vmatpush1.bf16.msra.mxu0 0
        %732 = vmatprep.subr.bf16.mxu0 0
        %733 = vmatpush1.bf16.msra.mxu0 0
        %734 = vmatprep.subr.bf16.mxu0 0
        %735 = vmatpush1.bf16.msra.mxu0 0
        %736 = vmatprep.subr.bf16.mxu0 0
        %737 = vmatpush1.bf16.msra.mxu0 0
        %738 = vmatprep.subr.bf16.mxu0 0
        %739 = vmatpush1.bf16.msra.mxu0 0
        %740 = vmatprep.subr.bf16.mxu0 0
        %741 = vmatpush1.bf16.msra.mxu0 0
        %742 = vmatprep.subr.bf16.mxu0 0
        %743 = vmatpush1.bf16.msra.mxu0 0
        %744 = vmatprep.subr.bf16.mxu0 0
        %745 = vmatpush1.bf16.msra.mxu0 0
        %746 = vmatprep.subr.bf16.mxu0 0
        %747 = vmatpush1.bf16.msra.mxu0 0
        %748 = vmatprep.subr.bf16.mxu0 0
        %749 = vmatpush1.bf16.msra.mxu0 0
        %750 = vmatprep.subr.bf16.mxu0 0
        %751 = vmatpush1.bf16.msra.mxu0 0
        %752 = vmatprep.mubr.bf16.mxu0 0
        %753 = vmatmul.mubr.bf16.gmra.mrb[0].mxu0 %v715
        %v754 = vpop.f32.mrb[0].mxu0
        %v755 = vadd.f32 %v693, %v754
        %v756 = vpop.f32.mrb[0].mxu0
        %v757 = vadd.f32 %v693, %v756
        %v758 = vpop.f32.mrb[0].mxu0
        %v759 = vadd.f32 %v698, %v758
        %v760 = vpop.f32.mrb[0].mxu0
        %v761 = vadd.f32 %v698, %v760
        %762 = vmatprep.mubr.bf16.mxu0 0
        %763 = vmatmul.mubr.bf16.gmra.mrb[0].mxu0 %v718
        %v764 = vpop.f32.mrb[0].mxu0
        %v765 = vadd.f32 %v703, %v764
        %v766 = vpop.f32.mrb[0].mxu0
        %v767 = vadd.f32 %v703, %v766
        %v768 = vpop.f32.mrb[0].mxu0
        %v769 = vpop.f32.mrb[0].mxu0
        %770 = vdwg.mxu0
        %771 = vst [vmem:[%s296] sm:$0xff] %v755
        %772 = vst [vmem:[%s296 + $0x8] sm:$0xff] %v757
        %773 = vst [vmem:[%s278] sm:$0xff] %v759
        %774 = vst [vmem:[%s278 + $0x8] sm:$0xff] %v761
        %775 = vst [vmem:[%s278 + $0x10] sm:$0xff] %v765
        %776 = vst [vmem:[%s278 + $0x18] sm:$0xff] %v767
        %s777 = smul.u32 2, %s23
        %p778 = scmp.lt.s32.totalorder %s22, 1
        %s779 = scalar_select %p778, %s22, 1
        %p780 = scmp.lt.s32.totalorder %s777, 3
        %s781 = scalar_select %p780, %s777, 3
        %s782 = smul.addr %s779, 4
        %s783 = sadd.s32 %s781, %s782
        %s784 = smul.addr %s783, 8
        %s785 = scalar_lea.vmem %s5, %s784
        %s786 = sand.u32 %s180, 1
        %s787 = sand.u32 %s180, 1
        %s788 = smul.addr %s787, 32
        %s789 = scalar_lea.vmem [#allocation3], %s788
        // Predicated region
        $region41: #{rpn_forward.1} parent=39 // pred_check
          %p790 = pneg %p162
        $region42: #{rpn_forward.1} parent=39 // pred_check_branch
          %792 = sbr.rel (%p790) target = $region44
        $region43: #{rpn_forward.1} parent=39 // pred_region
          %s793 = smul.u32 2, %s23
        $region44: #{rpn_forward.1} parent=39 // pred_fallthru
          _
        // Predicated region
        $region45: #{rpn_forward.1} parent=39 // pred_check
          %p794 = pneg %p190
        $region46: #{rpn_forward.1} parent=39 // pred_check_branch
          %796 = sbr.rel (%p794) target = $region48
        $region47: #{rpn_forward.1} parent=39 // pred_region
          %s797 = smul.u32 2, %s23
          %s798 = smul.addr %s22, 8
          %s799 = sadd.s32 %s797, %s798
          %s800 = smul.addr %s799, 8
          %s801 = scalar_lea.vmem %s6, %s800
          // Predicated region
          $region49: #{rpn_forward.1} parent=47 // pred_check
            _
          $region50: #{rpn_forward.1} parent=47 // pred_check_branch
            %803 = sbr.rel (0) target = $region52
          $region51: #{rpn_forward.1} parent=47 // pred_region
            // Predicated region
            $region53: #{rpn_forward.1} parent=51 // pred_check
              _
            $region54: #{rpn_forward.1} parent=51 // pred_check_branch
              %805 = sbr.rel (0) target = $region56
            $region55: #{rpn_forward.1} parent=51 // pred_region
              loop: start=0, step=1, limit=1
              $region57: #{rpn_forward.1} parent=55 // loop_pre_header
                _
              $region58: #{rpn_forward.1} parent=55 // loop_header
                %s807 = sphi 0, %s811
                %p808 = scmp.ge.s32.totalorder %s807, 1
                %s812 = sphi %s789, %s789
                %s813 = sphi %s801, %s801
              $region59: #{rpn_forward.1} parent=55 // loop_header_branch
                %810 = sbr.rel (%p808) target = $region63
              $region60: #{rpn_forward.1} parent=55 // loop_body
                %v814 = vld [vmem:[%s812] sm:$0xff]
                %815 = vst [vmem:[%s813] sm:$0xff] %v814
                %v816 = vld [vmem:[%s812 + $0x8] sm:$0xff]
                %817 = vst [vmem:[%s813 + $0x8] sm:$0xff] %v816
                %v818 = vld [vmem:[%s812 + $0x10] sm:$0xff]
                %819 = vst [vmem:[%s813 + $0x20] sm:$0xff] %v818
                %v820 = vld [vmem:[%s812 + $0x18] sm:$0xff]
                %821 = vst [vmem:[%s813 + $0x28] sm:$0xff] %v820
              $region61: #{rpn_forward.1} parent=55 // loop_footer
                %s811 = sadd.s32 1, %s807
              $region62: #{rpn_forward.1} parent=55 // loop_footer_branch
                %806 = sbr.rel target = $region58
              $region63: #{rpn_forward.1} parent=55 // loop_exit
                _
            $region56: #{rpn_forward.1} parent=51 // pred_fallthru
              _
            // Predicated region
            $region64: #{rpn_forward.1} parent=51 // pred_check
              _
            $region65: #{rpn_forward.1} parent=51 // pred_check_branch
              %823 = sbr.rel target = $region67
            $region66: #{rpn_forward.1} parent=51 // pred_region
              _
            $region67: #{rpn_forward.1} parent=51 // pred_fallthru
              _
          $region52: #{rpn_forward.1} parent=47 // pred_fallthru
            _
          %824 = vnop
        $region48: #{rpn_forward.1} parent=39 // pred_fallthru
          _
      $region40: #{rpn_forward.1} parent=5 // pred_fallthru
        _
      %p825 = scmp.le.s32.totalorder 2, %s13
      // Predicated region
      $region68: #{rpn_forward.1} parent=5 // pred_check
        %p826 = pneg %p825
      $region69: #{rpn_forward.1} parent=5 // pred_check_branch
        %828 = sbr.rel (%p826) target = $region71
      $region70: #{rpn_forward.1} parent=5 // pred_region
        %s829 = ssub.s32 %s13, 2
        // Predicated region
        $region72: #{rpn_forward.1} parent=70 // pred_check
          %p830 = pneg %p168
        $region73: #{rpn_forward.1} parent=70 // pred_check_branch
          %832 = sbr.rel (%p830) target = $region75
        $region74: #{rpn_forward.1} parent=70 // pred_region
          %s833 = smul.u32 2, %s25
          %p834 = scmp.lt.s32.totalorder %s24, 1
          %s835 = scalar_select %p834, %s24, 1
          %p836 = scmp.lt.s32.totalorder %s833, 3
          %s837 = scalar_select %p836, %s833, 3
          %s838 = smul.addr %s835, 4
          %s839 = sadd.s32 %s837, %s838
          %s840 = smul.addr %s839, 8
          %s841 = scalar_lea.vmem %s5, %s840
        $region75: #{rpn_forward.1} parent=70 // pred_fallthru
          _
        // Predicated region
        $region76: #{rpn_forward.1} parent=70 // pred_check
          %p842 = pneg %p196
        $region77: #{rpn_forward.1} parent=70 // pred_check_branch
          %844 = sbr.rel (%p842) target = $region79
        $region78: #{rpn_forward.1} parent=70 // pred_region
          %s845 = sand.u32 %s181, 1
          %s846 = sand.u32 %s181, 1
          %s847 = smul.addr %s846, 32
          %s848 = scalar_lea.vmem [#allocation3], %s847
        $region79: #{rpn_forward.1} parent=70 // pred_fallthru
          _
      $region71: #{rpn_forward.1} parent=5 // pred_fallthru
        _
    $region6: #{rpn_forward.1} parent=1 // loop_footer
      %s17 = sadd.s32 1, %s13
    $region7: #{rpn_forward.1} parent=1 // loop_footer_branch
      %12 = sbr.rel target = $region3
    $region8: #{rpn_forward.1} parent=1 // loop_exit
      _

</llo_original>
